<compile_context>
chip_gen: v5e
topology: v5e:2x2
jax: 0.10.0
libtpu: 0.0.40
codegen_flags: <defaults>
</compile_context>

<pallas_src>
import functools

import jax
import jax.numpy as jnp
from jax.experimental import pallas as pl
from jax.experimental.pallas import tpu as pltpu


# ----------------------------------------------------------------------------
# VMEM capacity helpers (v5e/v6e: 128 MiB, v7x: 64 MiB per TensorCore).
# ----------------------------------------------------------------------------
def _vmem_cap_bytes():
    try:
        info = pltpu.get_tpu_info()
        cap = int(getattr(info, "vmem_capacity_bytes", 0))
        if cap > 0:
            return cap
    except Exception:
        pass
    return 64 * 1024 * 1024  # conservative fallback (v7x per-core VMEM)


def _vmem_limit(working_set_bytes):
    cap = _vmem_cap_bytes()
    return int(min(cap * 3 // 4,
                   max(32 * 1024 * 1024, int(working_set_bytes) + (16 << 20))))


# ----------------------------------------------------------------------------
# Kernel 1: generic (M, N)-tiled linear  y = x @ w + b
# ----------------------------------------------------------------------------
def _linear_kernel(x_ref, w_ref, b_ref, o_ref):
    acc = jnp.dot(x_ref[...], w_ref[...], preferred_element_type=jnp.float32)
    o_ref[...] = (acc + b_ref[...].astype(jnp.float32)).astype(o_ref.dtype)


def pallas_linear(x, w, b, *, block_m=512, block_n=512, out_dtype=None):
    """Row (M) and output-column (N) tiled linear projection.

    N-tiling bounds weight residency to (D, bn) blocks, keeping the kernel
    scalable on v7x's 64 MiB VMEM and restoring pipelining headroom elsewhere.
    """
    M, D = x.shape
    Dout = w.shape[1]
    if out_dtype is None:
        out_dtype = x.dtype
    itm_x = x.dtype.itemsize
    itm_w = w.dtype.itemsize
    itm_o = jnp.dtype(out_dtype).itemsize

    bm = min(M, block_m)
    bn = min(Dout, block_n)

    def ws_of(bm_, bn_):
        # Every block double-buffered by the default pipeline.
        return (2 * (bm_ * D * itm_x + D * bn_ * itm_w + bm_ * bn_ * itm_o)
                + 2 * bn_ * 4)

    budget = int(_vmem_cap_bytes() * 0.7)
    while ws_of(bm, bn) > budget:            # shrink tiles, keep (8,128) legality
        if bn > 128 and bn % 256 == 0:
            bn //= 2
        elif bm > 128 and bm % 16 == 0:
            bm //= 2
        else:
            break

    return pl.pallas_call(
        _linear_kernel,
        out_shape=jax.ShapeDtypeStruct((M, Dout), out_dtype),
        grid=(pl.cdiv(M, bm), pl.cdiv(Dout, bn)),
        in_specs=[pl.BlockSpec((bm, D), lambda i, j: (i, 0)),
                  pl.BlockSpec((D, bn), lambda i, j: (0, j)),
                  pl.BlockSpec((1, bn), lambda i, j: (0, j))],
        out_specs=pl.BlockSpec((bm, bn), lambda i, j: (i, j)),
        compiler_params=pltpu.CompilerParams(
            dimension_semantics=("parallel", "parallel"),
            vmem_limit_bytes=_vmem_limit(ws_of(bm, bn))),
    )(x, w, b.reshape(1, Dout))


# ----------------------------------------------------------------------------
# Kernel 2: scaled dot-product attention over packed (B, L, H*d) projections
# ----------------------------------------------------------------------------
def _pick_head_group(n_head, d_k, d_v):
    """Smallest head-group g whose sliced widths are 128-lane aligned (or fall
    back to all heads, i.e. the full last dim)."""
    for g in range(1, n_head):
        if n_head % g == 0 and (g * d_k) % 128 == 0 and (g * d_v) % 128 == 0:
            return g, n_head // g
    return n_head, 1


def _attn_kernel(*refs, g, d_k, d_v, inv_temp, has_mask):
    if has_mask:
        q_ref, k_ref, v_ref, m_ref, o_ref, a_ref = refs
    else:
        q_ref, k_ref, v_ref, o_ref, a_ref = refs
        m_ref = None

    # q: (tq, g*d_k)  k: (Lk, g*d_k)  v: (Lk, g*d_v)
    # o: (tq, g*d_v)  a: (g, tq, Lk)  m: (tq, Lk) bf16 0/1
    # Operands stay in their native dtype (bf16-friendly MXU path); softmax in f32.
    q = q_ref[...] * inv_temp            # weak-typed scalar: keeps input dtype
    k = k_ref[...]
    v = v_ref[...]
    if m_ref is not None:
        masked = m_ref[...].astype(jnp.float32) == 0.0

    o_parts = []
    a_parts = []
    for h in range(g):                   # unrolled per-head loop within the group
        qh = q[:, h * d_k:(h + 1) * d_k]
        kh = k[:, h * d_k:(h + 1) * d_k]
        # NT contraction straight on the MXU (no explicit K transpose).
        s = jax.lax.dot_general(qh, kh, (((1,), (1,)), ((), ())),
                                preferred_element_type=jnp.float32)   # (tq, Lk)
        if m_ref is not None:
            s = jnp.where(masked, jnp.float32(-1e9), s)
        s = s - jnp.max(s, axis=-1, keepdims=True)
        e = jnp.exp(s)
        # Exact reciprocal: returned attention weights sum to 1.
        p = e * pl.reciprocal(jnp.sum(e, axis=-1, keepdims=True))
        a_parts.append(p)
        vh = v[:, h * d_v:(h + 1) * d_v]
        o_parts.append(jnp.dot(p.astype(v.dtype), vh,
                               preferred_element_type=jnp.float32))

    # Assemble group-locally; one lane-dense store per output instead of g
    # partial-lane stores.
    o_ref[...] = jnp.concatenate(o_parts, axis=-1).astype(o_ref.dtype)
    a_ref[...] = jnp.stack(a_parts, axis=0).astype(a_ref.dtype)


def pallas_attention(qp, kp, vp, mask, *, n_head, d_k, d_v, temperature,
                     attn_dtype=jnp.float32):
    B, Lq, _ = qp.shape
    Lk = kp.shape[1]
    g, n_groups = _pick_head_group(n_head, d_k, d_v)
    itm = qp.dtype.itemsize
    a_itm = jnp.dtype(attn_dtype).itemsize

    def ws_bytes(tq):                      # default double buffering everywhere
        kv = 2 * Lk * g * (d_k + d_v) * itm
        qo = 2 * tq * g * (d_k + d_v) * itm
        at = 2 * g * tq * Lk * a_itm
        mk = 2 * tq * Lk * 2 if mask is not None else 0
        return kv + qo + at + mk

    budget = int(_vmem_cap_bytes() * 0.7)
    tq = min(Lq, 8)
    for cand in (512, 256, 128, 64, 32, 16):   # biggest legal tile that fits
        if cand <= Lq and ws_bytes(cand) <= budget:
            tq = cand
            break

    grid = (B, n_groups, pl.cdiv(Lq, tq))

    in_specs = [
        pl.BlockSpec((None, tq, g * d_k), lambda b, hg, qi: (b, qi, hg)),
        pl.BlockSpec((None, Lk, g * d_k), lambda b, hg, qi: (b, 0, hg)),
        pl.BlockSpec((None, Lk, g * d_v), lambda b, hg, qi: (b, 0, hg)),
    ]
    inputs = [qp, kp, vp]
    if mask is not None:
        # bf16 0/1 mask: half the HBM/VMEM of int32, exact masked_fill semantics.
        in_specs.append(
            pl.BlockSpec((None, tq, Lk), lambda b, hg, qi: (b, qi, 0)))
        inputs.append(mask.astype(jnp.bfloat16))

    out_shape = (
        jax.ShapeDtypeStruct((B, Lq, n_head * d_v), qp.dtype),
        # TODO(synk): emit attention weights in bf16 (or drop them + flash-style
        #             KV tiling) when consumers allow; f32 kept to match torch.
        jax.ShapeDtypeStruct((B, n_head, Lq, Lk), attn_dtype),
    )
    out_specs = (
        pl.BlockSpec((None, tq, g * d_v), lambda b, hg, qi: (b, qi, hg)),
        pl.BlockSpec((None, g, tq, Lk), lambda b, hg, qi: (b, hg, qi, 0)),
    )

    kernel = functools.partial(_attn_kernel, g=g, d_k=d_k, d_v=d_v,
                               inv_temp=1.0 / float(temperature),
                               has_mask=mask is not None)
    return pl.pallas_call(
        kernel,
        out_shape=out_shape,
        grid=grid,
        in_specs=in_specs,
        out_specs=out_specs,
        compiler_params=pltpu.CompilerParams(
            dimension_semantics=("parallel", "parallel", "parallel"),
            vmem_limit_bytes=_vmem_limit(ws_bytes(tq))),
    )(*inputs)


# ----------------------------------------------------------------------------
# Kernel 3: output projection + residual + LayerNorm
# ----------------------------------------------------------------------------
def _out_norm_kernel(x_ref, w_ref, b_ref, res_ref, g_ref, beta_ref, o_ref, *, eps):
    y = jnp.dot(x_ref[...], w_ref[...], preferred_element_type=jnp.float32)
    y = y + b_ref[...].astype(jnp.float32) + res_ref[...].astype(jnp.float32)
    mu = jnp.mean(y, axis=-1, keepdims=True)
    var = jnp.mean(jnp.square(y - mu), axis=-1, keepdims=True)
    yn = (y - mu) * jax.lax.rsqrt(var + eps)
    o_ref[...] = (yn * g_ref[...].astype(jnp.float32)
                  + beta_ref[...].astype(jnp.float32)).astype(o_ref.dtype)


def _add_norm_kernel(y_ref, res_ref, g_ref, b_ref, o_ref, *, eps):
    y = y_ref[...].astype(jnp.float32) + res_ref[...].astype(jnp.float32)
    mu = jnp.mean(y, axis=-1, keepdims=True)
    var = jnp.mean(jnp.square(y - mu), axis=-1, keepdims=True)
    o_ref[...] = ((y - mu) * jax.lax.rsqrt(var + eps)
                  * g_ref[...].astype(jnp.float32)
                  + b_ref[...].astype(jnp.float32)).astype(o_ref.dtype)


def pallas_out_proj_norm(x2d, wd, bd, res2d, gamma, beta, *, eps=1e-6,
                         block_m=512):
    """dense(x) + residual -> LayerNorm.  Fused single kernel when the (Hdv, D)
    weight fits comfortably in VMEM; otherwise N-tiled projection followed by a
    residual+LayerNorm kernel (bounded weight residency for very large d_model)."""
    M, Hdv = x2d.shape
    D = wd.shape[1]
    bm = min(M, block_m)
    cap = _vmem_cap_bytes()
    fused_ws = (2 * wd.size * wd.dtype.itemsize
                + 2 * bm * (Hdv * x2d.dtype.itemsize + 2 * D * 4)
                + 6 * D * 4)

    if fused_ws <= int(cap * 0.6):
        kernel = functools.partial(_out_norm_kernel, eps=eps)
        return pl.pallas_call(
            kernel,
            out_shape=jax.ShapeDtypeStruct((M, D), x2d.dtype),
            grid=(pl.cdiv(M, bm),),
            in_specs=[pl.BlockSpec((bm, Hdv), lambda i: (i, 0)),
                      pl.BlockSpec((Hdv, D), lambda i: (0, 0)),
                      pl.BlockSpec((1, D), lambda i: (0, 0)),
                      pl.BlockSpec((bm, D), lambda i: (i, 0)),
                      pl.BlockSpec((1, D), lambda i: (0, 0)),
                      pl.BlockSpec((1, D), lambda i: (0, 0))],
            out_specs=pl.BlockSpec((bm, D), lambda i: (i, 0)),
            compiler_params=pltpu.CompilerParams(
                dimension_semantics=("parallel",),
                vmem_limit_bytes=_vmem_limit(fused_ws)),
        )(x2d, wd, bd.reshape(1, D), res2d, gamma.reshape(1, D),
          beta.reshape(1, D))

    # Fallback: bounded weight residency at the cost of one HBM roundtrip of the
    # (M, D) intermediate.
    y2d = pallas_linear(x2d, wd, bd, out_dtype=x2d.dtype)
    ws = 2 * bm * D * 3 * x2d.dtype.itemsize + 6 * D * 4
    kernel = functools.partial(_add_norm_kernel, eps=eps)
    return pl.pallas_call(
        kernel,
        out_shape=jax.ShapeDtypeStruct((M, D), x2d.dtype),
        grid=(pl.cdiv(M, bm),),
        in_specs=[pl.BlockSpec((bm, D), lambda i: (i, 0)),
                  pl.BlockSpec((bm, D), lambda i: (i, 0)),
                  pl.BlockSpec((1, D), lambda i: (0, 0)),
                  pl.BlockSpec((1, D), lambda i: (0, 0))],
        out_specs=pl.BlockSpec((bm, D), lambda i: (i, 0)),
        compiler_params=pltpu.CompilerParams(
            dimension_semantics=("parallel",),
            vmem_limit_bytes=_vmem_limit(ws)),
    )(y2d, res2d, gamma.reshape(1, D), beta.reshape(1, D))


# ----------------------------------------------------------------------------
# Multi-head attention forward (glue = reshapes/slices only)
# ----------------------------------------------------------------------------
def multi_head_attention(q, k, v, params, *, n_head, d_k, d_v, mask=None,
                         eps=1e-6, attn_dtype=jnp.float32):
    B, Lq, D = q.shape
    Lk, Lv = k.shape[1], v.shape[1]
    Hdk, Hdv = n_head * d_k, n_head * d_v
    residual = q

    if (q is k) and (k is v):
        # Aliased self-attention: one fused projection (x read once, one wide
        # MXU stream). TODO(synk): pre-concatenate the weights at init time.
        wqkv = jnp.concatenate([params["wq"], params["wk"], params["wv"]], axis=1)
        bqkv = jnp.concatenate([params["bq"], params["bk"], params["bv"]], axis=0)
        proj = pallas_linear(q.reshape(B * Lq, D), wqkv, bqkv)
        qp2 = proj[:, :Hdk]
        kp2 = proj[:, Hdk:2 * Hdk]
        vp2 = proj[:, 2 * Hdk:]
    else:
        qp2 = pallas_linear(q.reshape(B * Lq, D), params["wq"], params["bq"])
        kp2 = pallas_linear(k.reshape(B * Lk, D), params["wk"], params["bk"])
        vp2 = pallas_linear(v.reshape(B * Lv, D), params["wv"], params["bv"])

    qp = qp2.reshape(B, Lq, Hdk)
    kp = kp2.reshape(B, Lk, Hdk)
    vp = vp2.reshape(B, Lv, Hdv)

    o, attn_weights = pallas_attention(qp, kp, vp, mask,
                                       n_head=n_head, d_k=d_k, d_v=d_v,
                                       temperature=float(d_k) ** 0.5,
                                       attn_dtype=attn_dtype)

    out2d = pallas_out_proj_norm(o.reshape(B * Lq, Hdv),
                                 params["wd"], params["bd"],
                                 residual.reshape(B * Lq, D),
                                 params["gamma"], params["beta"], eps=eps)
    return out2d.reshape(B, Lq, D), attn_weights


# ----------------------------------------------------------------------------
# Pure-JAX reference for validation
# ----------------------------------------------------------------------------
def reference_mha(q, k, v, params, *, n_head, d_k, d_v, mask=None, eps=1e-6):
    B, Lq, D = q.shape
    Lk = k.shape[1]
    residual = q
    qp = (q @ params["wq"] + params["bq"]).reshape(B, Lq, n_head, d_k)
    kp = (k @ params["wk"] + params["bk"]).reshape(B, Lk, n_head, d_k)
    vp = (v @ params["wv"] + params["bv"]).reshape(B, Lk, n_head, d_v)
    qp, kp, vp = (t.transpose(0, 2, 1, 3) for t in (qp, kp, vp))
    scores = jnp.einsum("bhqd,bhkd->bhqk", qp / (float(d_k) ** 0.5), kp)
    if mask is not None:
        scores = jnp.where(mask[:, None, :, :] == 0, -1e9, scores)
    attn = jax.nn.softmax(scores, axis=-1)
    o = jnp.einsum("bhqk,bhkd->bhqd", attn, vp)
    o = o.transpose(0, 2, 1, 3).reshape(B, Lq, n_head * d_v)
    y = o @ params["wd"] + params["bd"] + residual
    mu = jnp.mean(y, axis=-1, keepdims=True)
    var = jnp.mean((y - mu) ** 2, axis=-1, keepdims=True)
    y = (y - mu) * jax.lax.rsqrt(var + eps) * params["gamma"] + params["beta"]
    return y, attn


# ----------------------------------------------------------------------------
# Deterministic parameter init + smoke tests
# ----------------------------------------------------------------------------
def init_params(key, d_model, n_head, d_k, d_v):
    ks = jax.random.split(key, 8)

    def lin(kw, kb, din, dout):
        bound = 1.0 / (din ** 0.5)
        w = jax.random.uniform(kw, (din, dout), jnp.float32, -bound, bound)
        b = jax.random.uniform(kb, (dout,), jnp.float32, -bound, bound)
        return w, b

    wq, bq = lin(ks[0], ks[1], d_model, n_head * d_k)
    wk, bk = lin(ks[2], ks[3], d_model, n_head * d_k)
    wv, bv = lin(ks[4], ks[5], d_model, n_head * d_v)
    wd, bd = lin(ks[6], ks[7], n_head * d_v, d_model)
    return {
        "wq": wq, "bq": bq, "wk": wk, "bk": bk, "wv": wv, "bv": bv,
        "wd": wd, "bd": bd,
        "gamma": jnp.ones((d_model,), jnp.float32),
        "beta": jnp.zeros((d_model,), jnp.float32),
    }


if __name__ == "__main__":
    B, L, d_model = 2, 8, 32
    n_head, d_k, d_v = 4, 8, 8

    key = jax.random.PRNGKey(0)
    kparam, kq, kk, kv, km = jax.random.split(key, 5)
    params = init_params(kparam, d_model, n_head, d_k, d_v)

    # --- Test 1: distinct q/k/v, same length, no mask -------------------------
    q = jax.random.normal(kq, (B, L, d_model), jnp.float32)
    k = jax.random.normal(kk, (B, L, d_model), jnp.float32)
    v = jax.random.normal(kv, (B, L, d_model), jnp.float32)

    out, attn = multi_head_attention(q, k, v, params,
                                     n_head=n_head, d_k=d_k, d_v=d_v)
    out = jax.block_until_ready(out)
    attn = jax.block_until_ready(attn)

    ref_out, ref_attn = reference_mha(q, k, v, params,
                                      n_head=n_head, d_k=d_k, d_v=d_v)
    assert out.shape == (B, L, d_model)
    assert attn.shape == (B, n_head, L, L)
    assert jnp.allclose(out, ref_out, atol=2e-3, rtol=2e-3)
    assert jnp.allclose(attn, ref_attn, atol=2e-3, rtol=2e-3)

    # --- Test 2: cross-attention shapes with mask ------------------------------
    Lk = 16
    k2 = jax.random.normal(kk, (B, Lk, d_model), jnp.float32)
    v2 = jax.random.normal(kv, (B, Lk, d_model), jnp.float32)
    mask = (jax.random.uniform(km, (B, L, Lk)) > 0.3).astype(jnp.int32)
    mask = mask.at[:, :, 0].set(1)   # at least one valid key per query row

    out2, attn2 = multi_head_attention(q, k2, v2, params, n_head=n_head,
                                       d_k=d_k, d_v=d_v, mask=mask)
    out2 = jax.block_until_ready(out2)
    attn2 = jax.block_until_ready(attn2)

    ref_out2, ref_attn2 = reference_mha(q, k2, v2, params, n_head=n_head,
                                        d_k=d_k, d_v=d_v, mask=mask)
    assert out2.shape == (B, L, d_model)
    assert attn2.shape == (B, n_head, L, Lk)
    assert jnp.allclose(out2, ref_out2, atol=2e-3, rtol=2e-3)
    assert jnp.allclose(attn2, ref_attn2, atol=2e-3, rtol=2e-3)

    # --- Test 3: aliased self-attention with causal mask (fused-QKV path) ------
    causal = jnp.broadcast_to(jnp.tril(jnp.ones((L, L), jnp.int32)), (B, L, L))
    out3, attn3 = multi_head_attention(q, q, q, params, n_head=n_head,
                                       d_k=d_k, d_v=d_v, mask=causal)
    out3 = jax.block_until_ready(out3)
    attn3 = jax.block_until_ready(attn3)

    ref_out3, ref_attn3 = reference_mha(q, q, q, params, n_head=n_head,
                                        d_k=d_k, d_v=d_v, mask=causal)
    assert jnp.allclose(out3, ref_out3, atol=2e-3, rtol=2e-3)
    assert jnp.allclose(attn3, ref_attn3, atol=2e-3, rtol=2e-3)

    print("KERNEL_OK")
</pallas_src>

<mosaic_0001>
module attributes {stable_mosaic.version = 11 : i64} {
  func.func @_linear_kernel(%arg0: i32, %arg1: i32, %arg2: memref<16x32xf32, #tpu.memory_space<vmem>>, %arg3: memref<32x32xf32, #tpu.memory_space<vmem>>, %arg4: memref<1x32xf32, #tpu.memory_space<vmem>>, %arg5: memref<16x32xf32, #tpu.memory_space<vmem>>) attributes {dimension_semantics = [#tpu.dimension_semantics<parallel>, #tpu.dimension_semantics<parallel>], iteration_bounds = array<i64: 1, 1>, scalar_prefetch = 0 : i64, scratch_operands = 0 : i64, tpu.core_type = #tpu.core_type<tc>, window_params = [{transform_indices = @transform_0, window_bounds = array<i64: 16, 32>}, {transform_indices = @transform_1, window_bounds = array<i64: 32, 32>}, {transform_indices = @transform_2, window_bounds = array<i64: 1, 32>}, {transform_indices = @transform_3, window_bounds = array<i64: 16, 32>}]} {
    %c0 = arith.constant 0 : index
    %c0_0 = arith.constant 0 : index
    %0 = vector.load %arg2[%c0, %c0_0] : memref<16x32xf32, #tpu.memory_space<vmem>>, vector<16x32xf32>
    %c0_1 = arith.constant 0 : index
    %c0_2 = arith.constant 0 : index
    %1 = vector.load %arg3[%c0_1, %c0_2] : memref<32x32xf32, #tpu.memory_space<vmem>>, vector<32x32xf32>
    %cst = arith.constant dense<0.000000e+00> : vector<16x32xf32>
    %2 = tpu.matmul %0, %1, %cst {dimension_numbers = #tpu.dot_dimension_numbers<[1], [0], [0], [1], [0, 0, 1, 1], [], []>} : vector<16x32xf32>, vector<32x32xf32>, vector<16x32xf32> -> vector<16x32xf32>
    %c0_3 = arith.constant 0 : index
    %c0_4 = arith.constant 0 : index
    %3 = vector.load %arg4[%c0_3, %c0_4] : memref<1x32xf32, #tpu.memory_space<vmem>>, vector<1x32xf32>
    %4 = vector.broadcast %3 : vector<1x32xf32> to vector<16x32xf32>
    %5 = arith.addf %2, %4 : vector<16x32xf32>
    %c0_5 = arith.constant 0 : index
    %c0_6 = arith.constant 0 : index
    %6 = vector.load %arg5[%c0_5, %c0_6] : memref<16x32xf32, #tpu.memory_space<vmem>>, vector<16x32xf32>
    tpu.vector_store %arg5[%c0_5, %c0_6], %5 {strides = array<i32>} : memref<16x32xf32, #tpu.memory_space<vmem>>, vector<16x32xf32>,
    return
  }
  func.func @transform_0(%arg0: i32, %arg1: i32) -> (i32, i32) {
    %c0_i32 = arith.constant 0 : i32
    %c0_i32_0 = arith.constant 0 : i32
    return %arg0, %c0_i32 : i32, i32
  }
  func.func @transform_1(%arg0: i32, %arg1: i32) -> (i32, i32) {
    %c0_i32 = arith.constant 0 : i32
    %c0_i32_0 = arith.constant 0 : i32
    return %c0_i32, %arg1 : i32, i32
  }
  func.func @transform_2(%arg0: i32, %arg1: i32) -> (i32, i32) {
    %c0_i32 = arith.constant 0 : i32
    %c0_i32_0 = arith.constant 0 : i32
    return %c0_i32, %arg1 : i32, i32
  }
  func.func @transform_3(%arg0: i32, %arg1: i32) -> (i32, i32) {
    %c0_i32 = arith.constant 0 : i32
    return %arg0, %arg1 : i32, i32
  }
}

</mosaic_0001>

<llo_original>
// kernel: tpu_custom_call.1
$region0: #{tpu_custom_call.1}
  #allocation0 [shape = 'u32[]', space=smem, size = 0x4, offset = 0x4, fixed_abs, tag = 'smem constant byte address 0x4 - core index']
  #allocation1 [shape = 'u32[72,128]{1,0:T(1,128)}', space=vmem, size = 0x9000, scoped, tag = 'internal scratch']
  %s0 = inlined_call_operand.hbm [shape: f32[16,32], index: 0, kind: input, shape index: {}]
  %s1 = inlined_call_operand.hbm [shape: f32[32,32], index: 1, kind: input, shape index: {}]
  %s2 = inlined_call_operand.vmem [shape: f32[1,32], index: 2, kind: input, shape index: {}]
  %s3 = inlined_call_operand.hbm [shape: f32[16,32], index: 3, kind: output, shape index: {}]
  %s4 = sld [smem:[#allocation0]]
  $region30: #{tpu_custom_call.1} parent=0
    _
  %s6 = ssub.s32 1, %s4
  %s7 = scalar_select 0, %s6, %s4
  $region1: #{tpu_custom_call.1} parent=0
    #allocation2 [shape = 'u8[8192]{0}', space=vmem, size = 0x2000, scoped, tag = 'input window, operand 0, single buffered']
    #allocation3 [shape = 's32[1]{0}', space=sflag, size = 0x4, scoped, tag = 'scoped memory for tpu_custom_call.1']
    #allocation4 [shape = 's32[1]{0}', space=sflag, size = 0x4, scoped, tag = 'scoped memory for tpu_custom_call.1']
    #allocation5 [shape = 'u8[16384]{0}', space=vmem, size = 0x4000, scoped, tag = 'input window, operand 1, single buffered']
    #allocation6 [shape = 's32[1]{0}', space=sflag, size = 0x4, scoped, tag = 'scoped memory for tpu_custom_call.1']
    #allocation7 [shape = 'u8[8192]{0}', space=vmem, size = 0x2000, scoped, tag = 'output window, operand 0, single buffered']
    %8 = vsyncpa [#allocation3], 0
    %9 = vsyncpa [#allocation6], 0
    %10 = vsyncpa [#allocation4], 0
    // Predicated region
    $region2: #{tpu_custom_call.1} parent=1 // pred_check
      _
    $region3: #{tpu_custom_call.1} parent=1 // pred_check_branch
      %12 = sbr.rel (0) target = $region5
    $region4: #{tpu_custom_call.1} parent=1 // pred_region
      %14 = vsyncadd [#allocation3], 0
      %s15 = sshll.u32 %s0, 4
      %s16 = int_to_ptr.hbm [resolvable:$true] %s15
      %s17 = sshll.u32 [#allocation2], 4
      %s18 = int_to_ptr.vmem [resolvable:$true] %s17
      %23 = dma.hbm_to_vmem [thread:$0]  %s16, 256, %s18, [#allocation3], 128, 128, 8
    $region5: #{tpu_custom_call.1} parent=1 // pred_fallthru
      _
    // Predicated region
    $region6: #{tpu_custom_call.1} parent=1 // pred_check
      _
    $region7: #{tpu_custom_call.1} parent=1 // pred_check_branch
      %25 = sbr.rel (0) target = $region9
    $region8: #{tpu_custom_call.1} parent=1 // pred_region
      %27 = vsyncadd [#allocation6], 0
      %s28 = sshll.u32 %s1, 4
      %s29 = int_to_ptr.hbm [resolvable:$true] %s28
      %s30 = sshll.u32 [#allocation5], 4
      %s31 = int_to_ptr.vmem [resolvable:$true] %s30
      %36 = dma.hbm_to_vmem [thread:$0]  %s29, 512, %s31, [#allocation6], 128, 128, 8
    $region9: #{tpu_custom_call.1} parent=1 // pred_fallthru
      _
    // Predicated region
    $region10: #{tpu_custom_call.1} parent=1 // pred_check
      _
    $region11: #{tpu_custom_call.1} parent=1 // pred_check_branch
      %38 = sbr.rel (0) target = $region13
    $region12: #{tpu_custom_call.1} parent=1 // pred_region
      _
    $region13: #{tpu_custom_call.1} parent=1 // pred_fallthru
      _
    // Predicated region
    $region14: #{tpu_custom_call.1} parent=1 // pred_check
      _
    $region15: #{tpu_custom_call.1} parent=1 // pred_check_branch
      %40 = sbr.rel (0) target = $region17
    $region16: #{tpu_custom_call.1} parent=1 // pred_region
      %42 = dma.done [#allocation3], 256
    $region17: #{tpu_custom_call.1} parent=1 // pred_fallthru
      _
    // Predicated region
    $region18: #{tpu_custom_call.1} parent=1 // pred_check
      _
    $region19: #{tpu_custom_call.1} parent=1 // pred_check_branch
      %44 = sbr.rel (0) target = $region21
    $region20: #{tpu_custom_call.1} parent=1 // pred_region
      %46 = dma.done [#allocation6], 512
    $region21: #{tpu_custom_call.1} parent=1 // pred_fallthru
      _
    %v47 = vld [vmem:[#allocation2] sm:$0xff]
    %v48 = vld [vmem:[#allocation2 + $0x8] sm:$0xff]
    %v49 = vld [vmem:[#allocation5] sm:$0xff]
    %v50 = vld [vmem:[#allocation5 + $0x8] sm:$0xff]
    %v51 = vld [vmem:[#allocation5 + $0x10] sm:$0xff]
    %v52 = vld [vmem:[#allocation5 + $0x18] sm:$0xff]
    %v53 = vld [vmem:[%s2] sm:$0x1]
    %v55 = vperm.slane %v53, 0
    %vm57 = vcmask 261120
    %v59 = vsel %vm57, %v47, 0
    %v62 = vsel %vm57, %v48, 0
    %64 = vmatpush.msra.mxu0 0.0
    %65 = vmatpush.msra.mxu0 0.0
    %66 = vmatpush.msra.mxu0 0.0
    %67 = vmatpush.msra.mxu0 0.0
    %68 = vmatpush.msra.mxu0 0.0
    %69 = vmatpush.msra.mxu0 0.0
    %70 = vmatpush.msra.mxu0 0.0
    %71 = vmatpush.msra.mxu0 0.0
    %72 = vmatpush.msra.mxu0 0.0
    %73 = vmatpush.msra.mxu0 0.0
    %74 = vmatpush.msra.mxu0 0.0
    %75 = vmatpush.msra.mxu0 0.0
    %76 = vmatpush.msra.mxu0 %v52
    %77 = vmatpush.msra.mxu0 %v51
    %78 = vmatpush.msra.mxu0 %v50
    %79 = vmatpush.msra.mxu0 %v49
    %80 = vmatmul.f32.gmra.mxu0 %v59
    %v81 = vpop.f32.mrf.mxu0
    %v82 = vadd.f32 %v55, %v81
    %83 = vmatmul.f32.gmra.mxu0 %v62
    %v84 = vpop.f32.mrf.mxu0
    %v85 = vadd.f32 %v55, %v84
    %86 = vdwg.mxu0
    %87 = vst.msk [vmem:[#allocation7] sm:$0xff] %vm57, %v82
    %88 = vst.msk [vmem:[#allocation7 + $0x8] sm:$0xff] %vm57, %v85
    // Predicated region
    $region22: #{tpu_custom_call.1} parent=1 // pred_check
      _
    $region23: #{tpu_custom_call.1} parent=1 // pred_check_branch
      %90 = sbr.rel (0) target = $region25
    $region24: #{tpu_custom_call.1} parent=1 // pred_region
      %92 = vsyncadd [#allocation4], 0
      %s93 = sshll.u32 [#allocation7], 4
      %s94 = int_to_ptr.vmem [resolvable:$true] %s93
      %s95 = sshll.u32 %s3, 4
      %s96 = int_to_ptr.hbm [resolvable:$true] %s95
      %101 = dma.vmem_to_hbm [thread:$0]  %s94, 256, %s96, [#allocation4], 128, 128, 8
    $region25: #{tpu_custom_call.1} parent=1 // pred_fallthru
      _
    // Predicated region
    $region26: #{tpu_custom_call.1} parent=1 // pred_check
      _
    $region27: #{tpu_custom_call.1} parent=1 // pred_check_branch
      %103 = sbr.rel (0) target = $region29
    $region28: #{tpu_custom_call.1} parent=1 // pred_region
      %105 = dma.done [#allocation4], 256
    $region29: #{tpu_custom_call.1} parent=1 // pred_fallthru
      _
    %106 = vsyncpa [#allocation3], 1
    %107 = vsyncpa [#allocation6], 1
    %108 = vsyncpa [#allocation4], 1

</llo_original>
